<compile_context>
chip_gen: v7x
topology: tpu7x:2x2x1
jax: 0.10.0
libtpu: 0.0.40
codegen_flags: <defaults>
</compile_context>

<pallas_src>
import jax
import jax.numpy as jnp
import numpy as np
from jax.experimental import pallas as pl
from jax.experimental.pallas import tpu as pltpu


# -----------------------------------------------------------------------------
# Kernel: 4x (Linear + ReLU) + fused folded-basis output Linear.
# -----------------------------------------------------------------------------
def nbeats_block_kernel(x_ref, w0_ref, wp_ref, bp_ref, out_ref):
    H = w0_ref.shape[1]
    Np = out_ref.shape[1]

    def dense(h_bf16, w_bf16, b_f32):
        # bf16 MXU matmul, f32 accumulation, f32 bias add.
        return jnp.dot(h_bf16, w_bf16, preferred_element_type=jnp.float32) + b_f32

    # Cast the streamed activation tile to bf16 once; cast h once per layer
    # (after the f32 ReLU) instead of inside every dot.
    h = x_ref[...].astype(jnp.bfloat16)
    h = jnp.maximum(dense(h, w0_ref[...], bp_ref[:, 0:H]), 0.0).astype(jnp.bfloat16)
    h = jnp.maximum(dense(h, wp_ref[:, 0:H],       bp_ref[:, H:2 * H]), 0.0).astype(jnp.bfloat16)
    h = jnp.maximum(dense(h, wp_ref[:, H:2 * H],   bp_ref[:, 2 * H:3 * H]), 0.0).astype(jnp.bfloat16)
    h = jnp.maximum(dense(h, wp_ref[:, 2 * H:3 * H], bp_ref[:, 3 * H:4 * H]), 0.0).astype(jnp.bfloat16)
    # Fused final Linear with [basis_back | basis_fore] folded in (lane-dense,
    # Np is a multiple of 128 -> unmasked stores, single output DMA stream).
    out_ref[...] = dense(h, wp_ref[:, 3 * H:3 * H + Np], bp_ref[:, 4 * H:4 * H + Np])


# -----------------------------------------------------------------------------
# Wrapper: batch-tiled parallel grid; packed weights VMEM-resident.
# -----------------------------------------------------------------------------
def _choose_tile_m(B, max_tile=512):
    """Largest sublane-aligned tile that divides B and keeps >=2 grid steps.

    Dividing B exactly avoids a wrapper-side jnp.pad copy of x; >=2 steps lets
    the 'parallel' grid axis shard across both TensorCores on v7x.
    """
    if B <= 8:
        return B
    for t in range(min(max_tile, B // 2), 7, -1):
        if B % t == 0 and t % 8 == 0:
            return t
    return min(B, max_tile)


def nbeats_block_forward(x, folded, *, tile_m=None):
    B, L = x.shape
    H = folded["w0"].shape[1]
    Np = folded["wp"].shape[1] - 3 * H
    F = folded["forecast_size"]
    assert folded["input_size"] == L

    if tile_m is None:
        tile_m = _choose_tile_m(B)
    n_tiles = pl.cdiv(B, tile_m)
    Bp = n_tiles * tile_m
    if Bp != B:
        # Fallback only when an explicit, non-dividing tile_m is requested.
        x = jnp.pad(x, ((0, Bp - B), (0, 0)))

    flops = 2 * Bp * (L * H + 3 * H * H + H * Np)
    weight_bytes = (folded["w0"].size * 2 + folded["wp"].size * 2
                    + folded["bp"].size * 4)
    bytes_accessed = Bp * L * 4 + weight_bytes + Bp * Np * 4

    def stream_spec(cols):            # per-grid-step streaming tile
        return pl.BlockSpec((tile_m, cols), lambda i: (i, 0))

    def resident_spec(shape):         # constant block -> DMA'd once, stays in VMEM
        return pl.BlockSpec(shape, lambda i: (0, 0))

    out = pl.pallas_call(
        nbeats_block_kernel,
        out_shape=jax.ShapeDtypeStruct((Bp, Np), jnp.float32),
        grid=(n_tiles,),
        in_specs=[
            stream_spec(L),                        # x
            resident_spec(folded["w0"].shape),     # (L, H)   bf16
            resident_spec(folded["wp"].shape),     # (H, 3H+Np) bf16 packed
            resident_spec(folded["bp"].shape),     # (1, 4H+Np) f32 packed
        ],
        out_specs=stream_spec(Np),
        compiler_params=pltpu.CompilerParams(
            dimension_semantics=("parallel",)),
        cost_estimate=pl.CostEstimate(flops=int(flops),
                                      transcendentals=0,
                                      bytes_accessed=int(bytes_accessed)),
    )(x, folded["w0"], folded["wp"], folded["bp"])

    backcast = out[:B, :L]
    forecast = out[:B, L:L + F]
    return backcast, forecast


# -----------------------------------------------------------------------------
# Parameters / basis construction (host side, one-time).
# -----------------------------------------------------------------------------
def make_params(key, input_size, hidden_size, theta_size, num_layers=4):
    """PyTorch nn.Linear-style init; weights stored (in_features, out_features)."""
    assert num_layers == 4, "kernel hard-codes the module default num_layers=4"

    def linear_init(k, fan_in, fan_out):
        kw, kb = jax.random.split(k)
        bound = 1.0 / np.sqrt(fan_in)
        w = jax.random.uniform(kw, (fan_in, fan_out), jnp.float32, -bound, bound)
        b = jax.random.uniform(kb, (1, fan_out), jnp.float32, -bound, bound)
        return w, b

    keys = jax.random.split(key, num_layers + 1)
    params = {}
    params["w0"], params["b0"] = linear_init(keys[0], input_size, hidden_size)
    params["w1"], params["b1"] = linear_init(keys[1], hidden_size, hidden_size)
    params["w2"], params["b2"] = linear_init(keys[2], hidden_size, hidden_size)
    params["w3"], params["b3"] = linear_init(keys[3], hidden_size, hidden_size)
    params["wt"], params["bt"] = linear_init(keys[4], hidden_size, theta_size)
    return params


def jetx_trend_basis(indices, theta_size):
    """B[i, t] = (indices[t] - 0.5)^(i+1), shape (theta_size, len(indices))."""
    powers = jnp.arange(1, theta_size + 1, dtype=jnp.float32)[:, None]
    return (indices[None, :] - 0.5) ** powers


def fold_params(params, basis_back, basis_fore):
    """Fold the fixed basis into the final Linear, fuse back|fore, pack weights.

    Note: the folded (Wt @ basis) weights are stored in bf16 together with the
    hidden-layer weights (f32 accumulation in-kernel); fine at the tolerances
    used here — keep them f32 if theta_size / input_size grow a lot.
    """
    H = params["w0"].shape[1]
    L = basis_back.shape[1]
    F = basis_fore.shape[1]

    w_out = jnp.concatenate([params["wt"] @ basis_back,
                             params["wt"] @ basis_fore], axis=1)   # (H, L+F)
    b_out = jnp.concatenate([params["bt"] @ basis_back,
                             params["bt"] @ basis_fore], axis=1)   # (1, L+F)

    # Pad the fused output width up to a multiple of 128 -> lane-dense,
    # unmasked stores. Padded columns have zero weight/bias (outputs 0).
    Np = ((L + F + 127) // 128) * 128
    pad = Np - (L + F)
    if pad:
        w_out = jnp.pad(w_out, ((0, 0), (0, pad)))
        b_out = jnp.pad(b_out, ((0, 0), (0, pad)))

    # Pack all K=H weights into one bf16 buffer (offsets 128-aligned for H%128==0)
    # and all biases into one f32 buffer -> 4 input DMA streams total.
    wp = jnp.concatenate([params["w1"], params["w2"], params["w3"], w_out],
                         axis=1).astype(jnp.bfloat16)               # (H, 3H+Np)
    bp = jnp.concatenate([params["b0"], params["b1"], params["b2"],
                          params["b3"], b_out], axis=1).astype(jnp.float32)

    return {
        "w0": params["w0"].astype(jnp.bfloat16),   # (L, H)
        "wp": wp,
        "bp": bp,
        "input_size": L,
        "forecast_size": F,
    }


# -----------------------------------------------------------------------------
# Pure-JAX f32 reference mirroring the PyTorch module (eval mode).
# -----------------------------------------------------------------------------
def reference_forward(x, params, basis_back, basis_fore):
    h = jnp.maximum(x @ params["w0"] + params["b0"], 0.0)
    h = jnp.maximum(h @ params["w1"] + params["b1"], 0.0)
    h = jnp.maximum(h @ params["w2"] + params["b2"], 0.0)
    h = jnp.maximum(h @ params["w3"] + params["b3"], 0.0)
    theta = h @ params["wt"] + params["bt"]
    backcast = theta @ basis_back      # (B, input_size)
    forecast = theta @ basis_fore      # (B, forecast_size)
    return backcast, forecast


if __name__ == "__main__":
    # Small shapes consistent with the module defaults (hidden_size=256,
    # num_layers=4, forecast_size=1, basis_function='jetx_trend').
    batch = 16
    input_size = 32
    hidden_size = 256
    forecast_size = 1
    num_layers = 4
    # jetx_trend default theta_size rule: max(8, min(12, input_size // 25)) -> 8
    theta_size = max(8, min(12, input_size // 25))

    key = jax.random.PRNGKey(0)
    kx, kp = jax.random.split(key)
    x = jax.random.normal(kx, (batch, input_size), dtype=jnp.float32)
    params = make_params(kp, input_size, hidden_size, theta_size, num_layers)

    # backcast_indices = arange(input_size)/input_size ; forecast_indices = arange(F)
    backcast_idx = jnp.arange(input_size, dtype=jnp.float32) / input_size
    forecast_idx = jnp.arange(forecast_size, dtype=jnp.float32)
    basis_back = jetx_trend_basis(backcast_idx, theta_size)   # (8, 32)
    basis_fore = jetx_trend_basis(forecast_idx, theta_size)   # (8, 1)

    folded = fold_params(params, basis_back, basis_fore)

    backcast, forecast = nbeats_block_forward(x, folded)
    backcast = jax.block_until_ready(backcast)
    forecast = jax.block_until_ready(forecast)

    ref_back, ref_fore = reference_forward(x, params, basis_back, basis_fore)
    assert backcast.shape == (batch, input_size)
    assert forecast.shape == (batch, forecast_size)
    err_b = float(jnp.max(jnp.abs(backcast - ref_back)))
    err_f = float(jnp.max(jnp.abs(forecast - ref_fore)))
    assert jnp.allclose(backcast, ref_back, rtol=2e-2, atol=1e-2), err_b
    assert jnp.allclose(forecast, ref_fore, rtol=2e-2, atol=1e-2), err_f

    print("KERNEL_OK")
</pallas_src>

<mosaic_0001>
module attributes {stable_mosaic.version = 11 : i64} {
  func.func @nbeats_block_kernel(%arg0: i32, %arg1: memref<8x32xf32, #tpu.memory_space<vmem>>, %arg2: memref<32x256xbf16, #tpu.memory_space<vmem>>, %arg3: memref<256x896xbf16, #tpu.memory_space<vmem>>, %arg4: memref<1x1152xf32, #tpu.memory_space<vmem>>, %arg5: memref<8x128xf32, #tpu.memory_space<vmem>>) attributes {dimension_semantics = [#tpu.dimension_semantics<parallel>], iteration_bounds = array<i64: 2>, scalar_prefetch = 0 : i64, scratch_operands = 0 : i64, tpu.core_type = #tpu.core_type<tc>, window_params = [{transform_indices = @transform_0, window_bounds = array<i64: 8, 32>}, {pipeline_mode = #tpu.pipeline_mode<synchronous>, transform_indices = @transform_1, window_bounds = array<i64: 32, 256>}, {pipeline_mode = #tpu.pipeline_mode<synchronous>, transform_indices = @transform_2, window_bounds = array<i64: 256, 896>}, {pipeline_mode = #tpu.pipeline_mode<synchronous>, transform_indices = @transform_3, window_bounds = array<i64: 1, 1152>}, {transform_indices = @transform_4, window_bounds = array<i64: 8, 128>}]} {
    %c0 = arith.constant 0 : index
    %c0_0 = arith.constant 0 : index
    %0 = vector.load %arg1[%c0, %c0_0] : memref<8x32xf32, #tpu.memory_space<vmem>>, vector<8x32xf32>
    %1 = arith.truncf %0 : vector<8x32xf32> to vector<8x32xbf16>
    %c0_1 = arith.constant 0 : index
    %c0_2 = arith.constant 0 : index
    %2 = vector.load %arg2[%c0_1, %c0_2] : memref<32x256xbf16, #tpu.memory_space<vmem>>, vector<32x256xbf16>
    %c0_3 = arith.constant 0 : index
    %c0_4 = arith.constant 0 : index
    %3 = vector.load %arg4[%c0_3, %c0_4] : memref<1x1152xf32, #tpu.memory_space<vmem>>, vector<1x256xf32>
    %cst = arith.constant dense<0.000000e+00> : vector<8x256xf32>
    %4 = tpu.matmul %1, %2, %cst {dimension_numbers = #tpu.dot_dimension_numbers<[1], [0], [0], [1], [0, 0, 1, 1], [], []>} : vector<8x32xbf16>, vector<32x256xbf16>, vector<8x256xf32> -> vector<8x256xf32>
    %5 = vector.broadcast %3 : vector<1x256xf32> to vector<8x256xf32>
    %6 = arith.addf %4, %5 : vector<8x256xf32>
    %cst_5 = arith.constant 0.000000e+00 : f32
    %7 = vector.broadcast %cst_5 : f32 to vector<8x256xf32>
    %8 = arith.maximumf %6, %7 : vector<8x256xf32>
    %9 = arith.truncf %8 : vector<8x256xf32> to vector<8x256xbf16>
    %c0_6 = arith.constant 0 : index
    %c0_7 = arith.constant 0 : index
    %10 = vector.load %arg3[%c0_6, %c0_7] : memref<256x896xbf16, #tpu.memory_space<vmem>>, vector<256x256xbf16>
    %c0_8 = arith.constant 0 : index
    %c256 = arith.constant 256 : index
    %11 = vector.load %arg4[%c0_8, %c256] : memref<1x1152xf32, #tpu.memory_space<vmem>>, vector<1x256xf32>
    %cst_9 = arith.constant dense<0.000000e+00> : vector<8x256xf32>
    %12 = tpu.matmul %9, %10, %cst_9 {dimension_numbers = #tpu.dot_dimension_numbers<[1], [0], [0], [1], [0, 0, 1, 1], [], []>} : vector<8x256xbf16>, vector<256x256xbf16>, vector<8x256xf32> -> vector<8x256xf32>
    %13 = vector.broadcast %11 : vector<1x256xf32> to vector<8x256xf32>
    %14 = arith.addf %12, %13 : vector<8x256xf32>
    %cst_10 = arith.constant 0.000000e+00 : f32
    %15 = vector.broadcast %cst_10 : f32 to vector<8x256xf32>
    %16 = arith.maximumf %14, %15 : vector<8x256xf32>
    %17 = arith.truncf %16 : vector<8x256xf32> to vector<8x256xbf16>
    %c0_11 = arith.constant 0 : index
    %c256_12 = arith.constant 256 : index
    %18 = vector.load %arg3[%c0_11, %c256_12] : memref<256x896xbf16, #tpu.memory_space<vmem>>, vector<256x256xbf16>
    %c0_13 = arith.constant 0 : index
    %c512 = arith.constant 512 : index
    %19 = vector.load %arg4[%c0_13, %c512] : memref<1x1152xf32, #tpu.memory_space<vmem>>, vector<1x256xf32>
    %cst_14 = arith.constant dense<0.000000e+00> : vector<8x256xf32>
    %20 = tpu.matmul %17, %18, %cst_14 {dimension_numbers = #tpu.dot_dimension_numbers<[1], [0], [0], [1], [0, 0, 1, 1], [], []>} : vector<8x256xbf16>, vector<256x256xbf16>, vector<8x256xf32> -> vector<8x256xf32>
    %21 = vector.broadcast %19 : vector<1x256xf32> to vector<8x256xf32>
    %22 = arith.addf %20, %21 : vector<8x256xf32>
    %cst_15 = arith.constant 0.000000e+00 : f32
    %23 = vector.broadcast %cst_15 : f32 to vector<8x256xf32>
    %24 = arith.maximumf %22, %23 : vector<8x256xf32>
    %25 = arith.truncf %24 : vector<8x256xf32> to vector<8x256xbf16>
    %c0_16 = arith.constant 0 : index
    %c512_17 = arith.constant 512 : index
    %26 = vector.load %arg3[%c0_16, %c512_17] : memref<256x896xbf16, #tpu.memory_space<vmem>>, vector<256x256xbf16>
    %c0_18 = arith.constant 0 : index
    %c768 = arith.constant 768 : index
    %27 = vector.load %arg4[%c0_18, %c768] : memref<1x1152xf32, #tpu.memory_space<vmem>>, vector<1x256xf32>
    %cst_19 = arith.constant dense<0.000000e+00> : vector<8x256xf32>
    %28 = tpu.matmul %25, %26, %cst_19 {dimension_numbers = #tpu.dot_dimension_numbers<[1], [0], [0], [1], [0, 0, 1, 1], [], []>} : vector<8x256xbf16>, vector<256x256xbf16>, vector<8x256xf32> -> vector<8x256xf32>
    %29 = vector.broadcast %27 : vector<1x256xf32> to vector<8x256xf32>
    %30 = arith.addf %28, %29 : vector<8x256xf32>
    %cst_20 = arith.constant 0.000000e+00 : f32
    %31 = vector.broadcast %cst_20 : f32 to vector<8x256xf32>
    %32 = arith.maximumf %30, %31 : vector<8x256xf32>
    %33 = arith.truncf %32 : vector<8x256xf32> to vector<8x256xbf16>
    %c0_21 = arith.constant 0 : index
    %c768_22 = arith.constant 768 : index
    %34 = vector.load %arg3[%c0_21, %c768_22] : memref<256x896xbf16, #tpu.memory_space<vmem>>, vector<256x128xbf16>
    %c0_23 = arith.constant 0 : index
    %c1024 = arith.constant 1024 : index
    %35 = vector.load %arg4[%c0_23, %c1024] : memref<1x1152xf32, #tpu.memory_space<vmem>>, vector<1x128xf32>
    %cst_24 = arith.constant dense<0.000000e+00> : vector<8x128xf32>
    %36 = tpu.matmul %33, %34, %cst_24 {dimension_numbers = #tpu.dot_dimension_numbers<[1], [0], [0], [1], [0, 0, 1, 1], [], []>} : vector<8x256xbf16>, vector<256x128xbf16>, vector<8x128xf32> -> vector<8x128xf32>
    %37 = vector.broadcast %35 : vector<1x128xf32> to vector<8x128xf32>
    %38 = arith.addf %36, %37 : vector<8x128xf32>
    %c0_25 = arith.constant 0 : index
    %c0_26 = arith.constant 0 : index
    %39 = vector.load %arg5[%c0_25, %c0_26] : memref<8x128xf32, #tpu.memory_space<vmem>>, vector<8x128xf32>
    tpu.vector_store %arg5[%c0_25, %c0_26], %38 {strides = array<i32>} : memref<8x128xf32, #tpu.memory_space<vmem>>, vector<8x128xf32>,
    return
  }
  func.func @transform_0(%arg0: i32) -> (i32, i32) {
    %c0_i32 = arith.constant 0 : i32
    %c0_i32_0 = arith.constant 0 : i32
    return %arg0, %c0_i32 : i32, i32
  }
  func.func @transform_1(%arg0: i32) -> (i32, i32) {
    %c0_i32 = arith.constant 0 : i32
    %c0_i32_0 = arith.constant 0 : i32
    %c0_i32_1 = arith.constant 0 : i32
    return %c0_i32, %c0_i32_0 : i32, i32
  }
  func.func @transform_2(%arg0: i32) -> (i32, i32) {
    %c0_i32 = arith.constant 0 : i32
    %c0_i32_0 = arith.constant 0 : i32
    %c0_i32_1 = arith.constant 0 : i32
    return %c0_i32, %c0_i32_0 : i32, i32
  }
  func.func @transform_3(%arg0: i32) -> (i32, i32) {
    %c0_i32 = arith.constant 0 : i32
    %c0_i32_0 = arith.constant 0 : i32
    %c0_i32_1 = arith.constant 0 : i32
    return %c0_i32, %c0_i32_0 : i32, i32
  }
  func.func @transform_4(%arg0: i32) -> (i32, i32) {
    %c0_i32 = arith.constant 0 : i32
    %c0_i32_0 = arith.constant 0 : i32
    return %arg0, %c0_i32 : i32, i32
  }
}

</mosaic_0001>

<llo_original>
// kernel: tpu_custom_call.1
$region0: #{tpu_custom_call.1}
  #allocation0 [shape = 'u32[]', space=smem, size = 0x4, offset = 0x4, fixed_abs, tag = 'smem constant byte address 0x4 - core index']
  #allocation1 [shape = 'u32[144,128]{1,0:T(1,128)}', space=vmem, size = 0x12000, scoped, tag = 'internal scratch']
  %s0 = inlined_call_operand.hbm [shape: f32[16,32], index: 0, kind: input, shape index: {}]
  %s1 = inlined_call_operand.hbm [shape: bf16[32,256], index: 1, kind: input, shape index: {}]
  %s2 = inlined_call_operand.hbm [shape: bf16[256,896], index: 2, kind: input, shape index: {}]
  %s3 = inlined_call_operand.vmem [shape: f32[1,1152], index: 3, kind: input, shape index: {}]
  %s4 = inlined_call_operand.hbm [shape: f32[16,128], index: 4, kind: output, shape index: {}]
  %s5 = sld [smem:[#allocation0]]
  $region61: #{tpu_custom_call.1} parent=0
    _
  %s7 = ssub.s32 1, %s5
  %s8 = scalar_select 0, %s7, %s5
  $region1: #{tpu_custom_call.1} parent=0
    #allocation2 [shape = 'u8[8192]{0}', space=vmem, size = 0x2000, scoped, tag = 'input window, operand 0']
    #allocation3 [shape = 's32[2]{0}', space=sflag, size = 0x8, scoped, tag = 'scoped memory for tpu_custom_call.1']
    #allocation4 [shape = 's32[2]{0}', space=sflag, size = 0x8, scoped, tag = 'scoped memory for tpu_custom_call.1']
    #allocation5 [shape = 'u8[16384]{0}', space=vmem, size = 0x4000, scoped, tag = 'input window, operand 1, single buffered']
    #allocation6 [shape = 's32[1]{0}', space=sflag, size = 0x4, scoped, tag = 'scoped memory for tpu_custom_call.1']
    #allocation7 [shape = 'u8[458752]{0}', space=vmem, size = 0x70000, scoped, tag = 'input window, operand 2, single buffered']
    #allocation8 [shape = 'u8[8192]{0}', space=vmem, size = 0x2000, scoped, tag = 'output window, operand 0']
    %9 = vsyncpa [#allocation3], 0
    %s10 = scalar_lea.sflag [#allocation3], 1
    %11 = vsyncpa %s10, 0
    %12 = vsyncpa [#allocation6], 0
    %13 = vsyncpa [#allocation4], 0
    %s14 = scalar_lea.sflag [#allocation4], 1
    %15 = vsyncpa %s14, 0
    loop: start=0, step=1, limit=4
    $region2: #{tpu_custom_call.1} parent=1 // loop_pre_header
      _
    $region3: #{tpu_custom_call.1} parent=1 // loop_header
      %s17 = sphi 0, %s21
      %p18 = scmp.ge.s32.totalorder %s17, 4
      %s27 = sphi 0, %s29
      %s30 = sphi 0, %s27
      %s31 = sphi 0, %s30
      %s47 = sphi 0, %s31
      %s51 = sphi 0, %s51
      %s53 = sphi 0, %s51
      %s54 = sphi 0, %s53
      %s68 = sphi 0, %s54
      %s72 = sphi 0, %s72
      %s74 = sphi 0, %s72
      %s75 = sphi 0, %s74
      %s89 = sphi 0, %s75
      %s93 = sphi 0, %s93
      %s95 = sphi 0, %s93
      %s96 = sphi 0, %s95
      %s110 = sphi 0, %s96
      %s116 = sphi 0, %s118
      %s119 = sphi 0, %s116
      %s120 = sphi 0, %s119
      %s136 = sphi 0, %s120
    $region4: #{tpu_custom_call.1} parent=1 // loop_header_branch
      %20 = sbr.rel (%p18) target = $region8
    $region5: #{tpu_custom_call.1} parent=1 // loop_body
      %s22 = ssub.s32 %s17, 1
      %s23 = ssub.s32 %s17, 2
      %s24 = sadd.s32 %s17, 1
      %s25 = ssub.s32 %s17, %s24
      %p26 = scmp.eq.s32.totalorder %s25, 0
      %s28 = sadd.s32 %s27, 1
      %s29 = scalar_select %p26, %s27, %s28
      %p32 = pneg %p26
      %p33 = scmp.eq.s32.totalorder %s17, 1
      %p34 = por %p32, %p33
      %p35 = scmp.ne.s32.totalorder %s27, %s30
      %p36 = scmp.eq.s32.totalorder %s17, 0
      %p37 = por %p35, %p36
      %p38 = scmp.ne.s32.totalorder %s27, %s30
      %p39 = scmp.eq.s32.totalorder %s22, 1
      %p40 = por %p38, %p39
      %p41 = scmp.ne.s32.totalorder %s30, %s31
      %p42 = scmp.eq.s32.totalorder %s22, 0
      %p43 = por %p41, %p42
      %p44 = scmp.ne.s32.totalorder %s30, %s31
      %p45 = scmp.eq.s32.totalorder %s23, 1
      %p46 = por %p44, %p45
      %p48 = scmp.ne.s32.totalorder %s31, %s47
      %p49 = scmp.eq.s32.totalorder %s23, 0
      %p50 = por %p48, %p49
      %s52 = sadd.s32 %s51, 1
      %p55 = scmp.eq.s32.totalorder %s17, 1
      %p56 = scmp.ne.s32.totalorder %s51, %s53
      %p57 = scmp.eq.s32.totalorder %s17, 0
      %p58 = por %p56, %p57
      %p59 = scmp.ne.s32.totalorder %s51, %s53
      %p60 = scmp.eq.s32.totalorder %s22, 1
      %p61 = por %p59, %p60
      %p62 = scmp.ne.s32.totalorder %s53, %s54
      %p63 = scmp.eq.s32.totalorder %s22, 0
      %p64 = por %p62, %p63
      %p65 = scmp.ne.s32.totalorder %s53, %s54
      %p66 = scmp.eq.s32.totalorder %s23, 1
      %p67 = por %p65, %p66
      %p69 = scmp.ne.s32.totalorder %s54, %s68
      %p70 = scmp.eq.s32.totalorder %s23, 0
      %p71 = por %p69, %p70
      %s73 = sadd.s32 %s72, 1
      %p76 = scmp.eq.s32.totalorder %s17, 1
      %p77 = scmp.ne.s32.totalorder %s72, %s74
      %p78 = scmp.eq.s32.totalorder %s17, 0
      %p79 = por %p77, %p78
      %p80 = scmp.ne.s32.totalorder %s72, %s74
      %p81 = scmp.eq.s32.totalorder %s22, 1
      %p82 = por %p80, %p81
      %p83 = scmp.ne.s32.totalorder %s74, %s75
      %p84 = scmp.eq.s32.totalorder %s22, 0
      %p85 = por %p83, %p84
      %p86 = scmp.ne.s32.totalorder %s74, %s75
      %p87 = scmp.eq.s32.totalorder %s23, 1
      %p88 = por %p86, %p87
      %p90 = scmp.ne.s32.totalorder %s75, %s89
      %p91 = scmp.eq.s32.totalorder %s23, 0
      %p92 = por %p90, %p91
      %s94 = sadd.s32 %s93, 1
      %p97 = scmp.eq.s32.totalorder %s17, 1
      %p98 = scmp.ne.s32.totalorder %s93, %s95
      %p99 = scmp.eq.s32.totalorder %s17, 0
      %p100 = por %p98, %p99
      %p101 = scmp.ne.s32.totalorder %s93, %s95
      %p102 = scmp.eq.s32.totalorder %s22, 1
      %p103 = por %p101, %p102
      %p104 = scmp.ne.s32.totalorder %s95, %s96
      %p105 = scmp.eq.s32.totalorder %s22, 0
      %p106 = por %p104, %p105
      %p107 = scmp.ne.s32.totalorder %s95, %s96
      %p108 = scmp.eq.s32.totalorder %s23, 1
      %p109 = por %p107, %p108
      %p111 = scmp.ne.s32.totalorder %s96, %s110
      %p112 = scmp.eq.s32.totalorder %s23, 0
      %p113 = por %p111, %p112
      %s114 = ssub.s32 %s17, %s24
      %p115 = scmp.eq.s32.totalorder %s114, 0
      %s117 = sadd.s32 %s116, 1
      %s118 = scalar_select %p115, %s116, %s117
      %p121 = pneg %p115
      %p122 = scmp.eq.s32.totalorder %s17, 1
      %p123 = por %p121, %p122
      %p124 = scmp.ne.s32.totalorder %s116, %s119
      %p125 = scmp.eq.s32.totalorder %s17, 0
      %p126 = por %p124, %p125
      %p127 = scmp.ne.s32.totalorder %s116, %s119
      %p128 = scmp.eq.s32.totalorder %s22, 1
      %p129 = por %p127, %p128
      %p130 = scmp.ne.s32.totalorder %s119, %s120
      %p131 = scmp.eq.s32.totalorder %s22, 0
      %p132 = por %p130, %p131
      %p133 = scmp.ne.s32.totalorder %s119, %s120
      %p134 = scmp.eq.s32.totalorder %s23, 1
      %p135 = por %p133, %p134
      %p137 = scmp.ne.s32.totalorder %s120, %s136
      %p138 = scmp.eq.s32.totalorder %s23, 0
      %p139 = por %p137, %p138
      %p140 = scmp.le.s32.totalorder 1, %s17
      %p141 = scmp.lt.s32.totalorder %s17, 3
      %p142 = pnand %p140, %p141
      %p143 = pneg %p142
      // Predicated region
      $region9: #{tpu_custom_call.1} parent=5 // pred_check
        _
      $region10: #{tpu_custom_call.1} parent=5 // pred_check_branch
        %145 = sbr.rel (%p142) target = $region12
      $region11: #{tpu_custom_call.1} parent=5 // pred_region
        %s146 = ssub.s32 %s17, 1
        // Predicated region
        $region13: #{tpu_custom_call.1} parent=11 // pred_check
          %p147 = pneg %p64
        $region14: #{tpu_custom_call.1} parent=11 // pred_check_branch
          %149 = sbr.rel (%p147) target = $region16
        $region15: #{tpu_custom_call.1} parent=11 // pred_region
          %s151 = ssub.s32 512, 512
          %152 = vsyncadd [#allocation6], %s151
          %s153 = sshll.u32 [#allocation5], 4
          %s154 = int_to_ptr.vmem [resolvable:$true] %s153
          %159 = dma.hbm_to_vmem [thread:$0]  %s1, 512, %s154, [#allocation6], 128, 128, 8
        $region16: #{tpu_custom_call.1} parent=11 // pred_fallthru
          _
        // Predicated region
        $region17: #{tpu_custom_call.1} parent=11 // pred_check
          %p160 = pneg %p85
        $region18: #{tpu_custom_call.1} parent=11 // pred_check_branch
          %162 = sbr.rel (%p160) target = $region20
        $region19: #{tpu_custom_call.1} parent=11 // pred_region
          %s164 = ssub.s32 14336, 14336
          %165 = vsyncadd [#allocation6], %s164
          %s166 = sshll.u32 [#allocation7], 4
          %s167 = int_to_ptr.vmem [resolvable:$true] %s166
          %172 = dma.hbm_to_vmem [thread:$0]  %s2, 14336, %s167, [#allocation6], 448, 448, 28
        $region20: #{tpu_custom_call.1} parent=11 // pred_fallthru
          _
        // Predicated region
        $region21: #{tpu_custom_call.1} parent=11 // pred_check
          %p173 = pneg %p106
        $region22: #{tpu_custom_call.1} parent=11 // pred_check_branch
          %175 = sbr.rel (%p173) target = $region24
        $region23: #{tpu_custom_call.1} parent=11 // pred_region
          _
        $region24: #{tpu_custom_call.1} parent=11 // pred_fallthru
          _
      $region12: #{tpu_custom_call.1} parent=5 // pred_fallthru
        _
      %p176 = scmp.lt.s32.totalorder %s17, 2
      // Predicated region
      $region25: #{tpu_custom_call.1} parent=5 // pred_check
        %p177 = pneg %p176
      $region26: #{tpu_custom_call.1} parent=5 // pred_check_branch
        %179 = sbr.rel (%p177) target = $region28
      $region27: #{tpu_custom_call.1} parent=5 // pred_region
        // Predicated region
        $region29: #{tpu_custom_call.1} parent=27 // pred_check
          %p180 = pneg %p37
        $region30: #{tpu_custom_call.1} parent=27 // pred_check_branch
          %182 = sbr.rel (%p180) target = $region32
        $region31: #{tpu_custom_call.1} parent=27 // pred_region
          %s183 = sand.u32 %s27, 1
          %s184 = scalar_lea.sflag [#allocation3], %s183
          %s185 = sand.u32 %s27, 1
          %s186 = smul.addr %s185, 8
          %s187 = scalar_lea.vmem [#allocation2], %s186
          %s189 = ssub.s32 128, 128
          %190 = vsyncadd %s184, %s189
          %s191 = smul.addr %s17, 128
          %s192 = scalar_lea.hbm %s0, %s191
          %s194 = sshll.u32 %s187, 4
          %s195 = int_to_ptr.vmem [resolvable:$true] %s194
          %197 = dma.hbm_to_vmem [thread:$0]  %s192, 128, %s195, %s184
        $region32: #{tpu_custom_call.1} parent=27 // pred_fallthru
          _
      $region28: #{tpu_custom_call.1} parent=5 // pred_fallthru
        _
      %p198 = scmp.le.s32.totalorder 1, %s17
      %p199 = scmp.lt.s32.totalorder %s17, 3
      %p200 = pnand %p198, %p199
      %p201 = pneg %p200
      // Predicated region
      $region33: #{tpu_custom_call.1} parent=5 // pred_check
        _
      $region34: #{tpu_custom_call.1} parent=5 // pred_check_branch
        %203 = sbr.rel (%p200) target = $region36
      $region35: #{tpu_custom_call.1} parent=5 // pred_region
        %s204 = ssub.s32 %s17, 1
        %s205 = sand.u32 %s30, 1
        %s206 = scalar_lea.sflag [#allocation3], %s205
        %s207 = sand.u32 %s30, 1
        %s208 = smul.addr %s207, 8
        %s209 = scalar_lea.vmem [#allocation2], %s208
        // Predicated region
        $region37: #{tpu_custom_call.1} parent=35 // pred_check
          %p210 = pneg %p43
        $region38: #{tpu_custom_call.1} parent=35 // pred_check_branch
          %212 = sbr.rel (%p210) target = $region40
        $region39: #{tpu_custom_call.1} parent=35 // pred_region
          %213 = dma.done %s206, 128
        $region40: #{tpu_custom_call.1} parent=35 // pred_fallthru
          _
        // Predicated region
        $region41: #{tpu_custom_call.1} parent=35 // pred_check
          %p214 = pneg %p64
        $region42: #{tpu_custom_call.1} parent=35 // pred_check_branch
          %216 = sbr.rel (%p214) target = $region44
        $region43: #{tpu_custom_call.1} parent=35 // pred_region
          %217 = dma.done [#allocation6], 512
        $region44: #{tpu_custom_call.1} parent=35 // pred_fallthru
          _
        // Predicated region
        $region45: #{tpu_custom_call.1} parent=35 // pred_check
          %p218 = pneg %p85
        $region46: #{tpu_custom_call.1} parent=35 // pred_check_branch
          %220 = sbr.rel (%p218) target = $region48
        $region47: #{tpu_custom_call.1} parent=35 // pred_region
          %221 = dma.done [#allocation6], 14336
        $region48: #{tpu_custom_call.1} parent=35 // pred_fallthru
          _
        %s222 = sand.u32 %s30, 1
        %s223 = scalar_lea.sflag [#allocation3], %s222
        %s224 = sand.u32 %s30, 1
        %s225 = smul.addr %s224, 8
        %s226 = scalar_lea.vmem [#allocation2], %s225
        %p227 = pneg %p43
        %p228 = pneg %p40
        %p229 = pneg %p64
        %p230 = pneg %p61
        %p231 = pneg %p85
        %p232 = pneg %p82
        %p233 = pneg %p106
        %p234 = pneg %p103
        %p235 = pneg %p132
        %p236 = pneg %p129
        %s237 = sand.u32 %s119, 1
        %s238 = scalar_lea.sflag [#allocation4], %s237
        %s239 = sand.u32 %s119, 1
        %s240 = smul.addr %s239, 8
        %s241 = scalar_lea.vmem [#allocation8], %s240
        %v243 = vld [vmem:[%s209] sm:$0xff]
        %v244 = vpack.c.bf16 %v243, %v243
        %v245 = vld [vmem:[#allocation5] sm:$0xff]
        %v246 = vld [vmem:[#allocation5 + $0x8] sm:$0xff]
        %v247 = vld [vmem:[#allocation5 + $0x10] sm:$0xff]
        %v248 = vld [vmem:[#allocation5 + $0x18] sm:$0xff]
        %v249 = vld [vmem:[%s3] sm:$0x3]
        %v251 = vlaneseq
        %v252 = vshrl.u32 %v251, 7
        %v253 = vsub.s32 0, %v252
        %v254 = vrot.slane %v249, %v253
        %v255 = vlaneseq
        %v256 = vshrl.u32 %v255, 7
        %v257 = vsub.s32 1, %v256
        %v258 = vrot.slane %v249, %v257
        %v265 = vunpack.c.l.b16 %v245
        %v266 = vunpack.c.h.b16 %v245
        %v267 = vunpack.c.l.b16 %v246
        %v268 = vunpack.c.h.b16 %v246
        %v269 = vunpack.c.l.b16 %v247
        %v270 = vunpack.c.h.b16 %v247
        %v271 = vunpack.c.l.b16 %v248
        %v272 = vunpack.c.h.b16 %v248
        %v273 = vpack.c.b16 %v267, %v265
        %v274 = vpack.c.b16 %v268, %v266
        %v275 = vpack.c.b16 %v271, %v269
        %v276 = vpack.c.b16 %v272, %v270
        %vm281 = vcmask 261120
        %v283 = vsel %vm281, %v244, 0
        %285 = vmatprep.subr.bf16.mxu0 %v274
        %286 = vmatpush1.bf16.msra.mxu0 %v273
        %287 = vmatprep.subr.bf16.mxu0 %v276
        %288 = vmatpush1.bf16.msra.mxu0 %v275
        %289 = vmatprep.subr.bf16.mxu0 0
        %290 = vmatpush1.bf16.msra.mxu0 0
        %291 = vmatprep.subr.bf16.mxu0 0
        %292 = vmatpush1.bf16.msra.mxu0 0
        %293 = vmatprep.subr.bf16.mxu0 0
        %294 = vmatpush1.bf16.msra.mxu0 0
        %295 = vmatprep.subr.bf16.mxu0 0
        %296 = vmatpush1.bf16.msra.mxu0 0
        %297 = vmatprep.subr.bf16.mxu0 0
        %298 = vmatpush1.bf16.msra.mxu0 0
        %299 = vmatprep.subr.bf16.mxu0 0
        %300 = vmatpush1.bf16.msra.mxu0 0
        %301 = vmatprep.subr.bf16.mxu0 0
        %302 = vmatpush1.bf16.msra.mxu0 0
        %303 = vmatprep.subr.bf16.mxu0 0
        %304 = vmatpush1.bf16.msra.mxu0 0
        %305 = vmatprep.subr.bf16.mxu0 0
        %306 = vmatpush1.bf16.msra.mxu0 0
        %307 = vmatprep.subr.bf16.mxu0 0
        %308 = vmatpush1.bf16.msra.mxu0 0
        %309 = vmatprep.subr.bf16.mxu0 0
        %310 = vmatpush1.bf16.msra.mxu0 0
        %311 = vmatprep.subr.bf16.mxu0 0
        %312 = vmatpush1.bf16.msra.mxu0 0
        %313 = vmatprep.subr.bf16.mxu0 0
        %314 = vmatpush1.bf16.msra.mxu0 0
        %315 = vmatprep.subr.bf16.mxu0 0
        %316 = vmatpush1.bf16.msra.mxu0 0
        %317 = vmatprep.mubr.bf16.mxu0 0
        %318 = vmatmul.mubr.bf16.gmra.mrb[0].mxu0 %v283
        %v319 = vpop.f32.mrb[0].mxu0
        %v320 = vadd.f32 %v254, %v319
        %v321 = vpop.f32.mrb[0].mxu0
        %v322 = vadd.f32 %v258, %v321
        %v323 = vpop.f32.mrb[0].mxu0
        %v324 = vpop.f32.mrb[0].mxu0
        %325 = vdwg.mxu0
        %v326 = vmax.f32 %v320, 0.0
        %v327 = vmax.f32 %v322, 0.0
        %v328 = vpack.c.bf16 %v326, %v326
        %v329 = vpack.c.bf16 %v327, %v327
        %v330 = vld [vmem:[#allocation7] sm:$0xff]
        %v331 = vld [vmem:[#allocation7 + $0x1c] sm:$0xff]
        %v332 = vld [vmem:[#allocation7 + $0x38] sm:$0xff]
        %v333 = vld [vmem:[#allocation7 + $0x54] sm:$0xff]
        %v334 = vld [vmem:[#allocation7 + $0x70] sm:$0xff]
        %v335 = vld [vmem:[#allocation7 + $0x8c] sm:$0xff]
        %v336 = vld [vmem:[#allocation7 + $0xa8] sm:$0xff]
        %v337 = vld [vmem:[#allocation7 + $0xc4] sm:$0xff]
        %v338 = vld [vmem:[#allocation7 + $0xe0] sm:$0xff]
        %v339 = vld [vmem:[#allocation7 + $0xfc] sm:$0xff]
        %v340 = vld [vmem:[#allocation7 + $0x118] sm:$0xff]
        %v341 = vld [vmem:[#allocation7 + $0x134] sm:$0xff]
        %v342 = vld [vmem:[#allocation7 + $0x150] sm:$0xff]
        %v343 = vld [vmem:[#allocation7 + $0x16c] sm:$0xff]
        %v344 = vld [vmem:[#allocation7 + $0x188] sm:$0xff]
        %v345 = vld [vmem:[#allocation7 + $0x1a4] sm:$0xff]
        %v346 = vld [vmem:[#allocation7 + $0x1c0] sm:$0xff]
        %v347 = vld [vmem:[#allocation7 + $0x1dc] sm:$0xff]
        %v348 = vld [vmem:[#allocation7 + $0x1f8] sm:$0xff]
        %v349 = vld [vmem:[#allocation7 + $0x214] sm:$0xff]
        %v350 = vld [vmem:[#allocation7 + $0x230] sm:$0xff]
        %v351 = vld [vmem:[#allocation7 + $0x24c] sm:$0xff]
        %v352 = vld [vmem:[#allocation7 + $0x268] sm:$0xff]
        %v353 = vld [vmem:[#allocation7 + $0x284] sm:$0xff]
        %v354 = vld [vmem:[#allocation7 + $0x2a0] sm:$0xff]
        %v355 = vld [vmem:[#allocation7 + $0x2bc] sm:$0xff]
        %v356 = vld [vmem:[#allocation7 + $0x2d8] sm:$0xff]
        %v357 = vld [vmem:[#allocation7 + $0x2f4] sm:$0xff]
        %v358 = vld [vmem:[#allocation7 + $0x310] sm:$0xff]
        %v359 = vld [vmem:[#allocation7 + $0x32c] sm:$0xff]
        %v360 = vld [vmem:[#allocation7 + $0x348] sm:$0xff]
        %v361 = vld [vmem:[#allocation7 + $0x364] sm:$0xff]
        %v362 = vld [vmem:[%s3 + $0x2] sm:$0x3]
        %v364 = vlaneseq
        %v365 = vshrl.u32 %v364, 7
        %v366 = vsub.s32 0, %v365
        %v367 = vrot.slane %v362, %v366
        %v368 = vlaneseq
        %v369 = vshrl.u32 %v368, 7
        %v370 = vsub.s32 1, %v369
        %v371 = vrot.slane %v362, %v370
        %v406 = vunpack.c.l.b16 %v330
        %v407 = vunpack.c.h.b16 %v330
        %v408 = vunpack.c.l.b16 %v331
        %v409 = vunpack.c.h.b16 %v331
        %v410 = vunpack.c.l.b16 %v332
        %v411 = vunpack.c.h.b16 %v332
        %v412 = vunpack.c.l.b16 %v333
        %v413 = vunpack.c.h.b16 %v333
        %v414 = vunpack.c.l.b16 %v334
        %v415 = vunpack.c.h.b16 %v334
        %v416 = vunpack.c.l.b16 %v335
        %v417 = vunpack.c.h.b16 %v335
        %v418 = vunpack.c.l.b16 %v336
        %v419 = vunpack.c.h.b16 %v336
        %v420 = vunpack.c.l.b16 %v337
        %v421 = vunpack.c.h.b16 %v337
        %v422 = vunpack.c.l.b16 %v338
        %v423 = vunpack.c.h.b16 %v338
        %v424 = vunpack.c.l.b16 %v339
        %v425 = vunpack.c.h.b16 %v339
        %v426 = vunpack.c.l.b16 %v340
        %v427 = vunpack.c.h.b16 %v340
        %v428 = vunpack.c.l.b16 %v341
        %v429 = vunpack.c.h.b16 %v341
        %v430 = vunpack.c.l.b16 %v342
        %v431 = vunpack.c.h.b16 %v342
        %v432 = vunpack.c.l.b16 %v343
        %v433 = vunpack.c.h.b16 %v343
        %v434 = vunpack.c.l.b16 %v344
        %v435 = vunpack.c.h.b16 %v344
        %v436 = vunpack.c.l.b16 %v345
        %v437 = vunpack.c.h.b16 %v345
        %v438 = vunpack.c.l.b16 %v346
        %v439 = vunpack.c.h.b16 %v346
        %v440 = vunpack.c.l.b16 %v347
        %v441 = vunpack.c.h.b16 %v347
        %v442 = vunpack.c.l.b16 %v348
        %v443 = vunpack.c.h.b16 %v348
        %v444 = vunpack.c.l.b16 %v349
        %v445 = vunpack.c.h.b16 %v349
        %v446 = vunpack.c.l.b16 %v350
        %v447 = vunpack.c.h.b16 %v350
        %v448 = vunpack.c.l.b16 %v351
        %v449 = vunpack.c.h.b16 %v351
        %v450 = vunpack.c.l.b16 %v352
        %v451 = vunpack.c.h.b16 %v352
        %v452 = vunpack.c.l.b16 %v353
        %v453 = vunpack.c.h.b16 %v353
        %v454 = vunpack.c.l.b16 %v354
        %v455 = vunpack.c.h.b16 %v354
        %v456 = vunpack.c.l.b16 %v355
        %v457 = vunpack.c.h.b16 %v355
        %v458 = vunpack.c.l.b16 %v356
        %v459 = vunpack.c.h.b16 %v356
        %v460 = vunpack.c.l.b16 %v357
        %v461 = vunpack.c.h.b16 %v357
        %v462 = vunpack.c.l.b16 %v358
        %v463 = vunpack.c.h.b16 %v358
        %v464 = vunpack.c.l.b16 %v359
        %v465 = vunpack.c.h.b16 %v359
        %v466 = vunpack.c.l.b16 %v360
        %v467 = vunpack.c.h.b16 %v360
        %v468 = vunpack.c.l.b16 %v361
        %v469 = vunpack.c.h.b16 %v361
        %v470 = vpack.c.b16 %v408, %v406
        %v471 = vpack.c.b16 %v409, %v407
        %v472 = vpack.c.b16 %v412, %v410
        %v473 = vpack.c.b16 %v413, %v411
        %v474 = vpack.c.b16 %v416, %v414
        %v475 = vpack.c.b16 %v417, %v415
        %v476 = vpack.c.b16 %v420, %v418
        %v477 = vpack.c.b16 %v421, %v419
        %v478 = vpack.c.b16 %v424, %v422
        %v479 = vpack.c.b16 %v425, %v423
        %v480 = vpack.c.b16 %v428, %v426
        %v481 = vpack.c.b16 %v429, %v427
        %v482 = vpack.c.b16 %v432, %v430
        %v483 = vpack.c.b16 %v433, %v431
        %v484 = vpack.c.b16 %v436, %v434
        %v485 = vpack.c.b16 %v437, %v435
        %v486 = vpack.c.b16 %v440, %v438
        %v487 = vpack.c.b16 %v441, %v439
        %v488 = vpack.c.b16 %v444, %v442
        %v489 = vpack.c.b16 %v445, %v443
        %v490 = vpack.c.b16 %v448, %v446
        %v491 = vpack.c.b16 %v449, %v447
        %v492 = vpack.c.b16 %v452, %v450
        %v493 = vpack.c.b16 %v453, %v451
        %v494 = vpack.c.b16 %v456, %v454
        %v495 = vpack.c.b16 %v457, %v455
        %v496 = vpack.c.b16 %v460, %v458
        %v497 = vpack.c.b16 %v461, %v459
        %v498 = vpack.c.b16 %v464, %v462
        %v499 = vpack.c.b16 %v465, %v463
        %v500 = vpack.c.b16 %v468, %v466
        %v501 = vpack.c.b16 %v469, %v467
        %534 = vmatprep.subr.bf16.mxu0 %v471
        %535 = vmatpush1.bf16.msra.mxu0 %v470
        %536 = vmatprep.subr.bf16.mxu0 %v473
        %537 = vmatpush1.bf16.msra.mxu0 %v472
        %538 = vmatprep.subr.bf16.mxu0 %v475
        %539 = vmatpush1.bf16.msra.mxu0 %v474
        %540 = vmatprep.subr.bf16.mxu0 %v477
        %541 = vmatpush1.bf16.msra.mxu0 %v476
        %542 = vmatprep.subr.bf16.mxu0 %v479
        %543 = vmatpush1.bf16.msra.mxu0 %v478
        %544 = vmatprep.subr.bf16.mxu0 %v481
        %545 = vmatpush1.bf16.msra.mxu0 %v480
        %546 = vmatprep.subr.bf16.mxu0 %v483
        %547 = vmatpush1.bf16.msra.mxu0 %v482
        %548 = vmatprep.subr.bf16.mxu0 %v485
        %549 = vmatpush1.bf16.msra.mxu0 %v484
        %550 = vmatprep.subr.bf16.mxu0 %v487
        %551 = vmatpush1.bf16.msra.mxu0 %v486
        %552 = vmatprep.subr.bf16.mxu0 %v489
        %553 = vmatpush1.bf16.msra.mxu0 %v488
        %554 = vmatprep.subr.bf16.mxu0 %v491
        %555 = vmatpush1.bf16.msra.mxu0 %v490
        %556 = vmatprep.subr.bf16.mxu0 %v493
        %557 = vmatpush1.bf16.msra.mxu0 %v492
        %558 = vmatprep.subr.bf16.mxu0 %v495
        %559 = vmatpush1.bf16.msra.mxu0 %v494
        %560 = vmatprep.subr.bf16.mxu0 %v497
        %561 = vmatpush1.bf16.msra.mxu0 %v496
        %562 = vmatprep.subr.bf16.mxu0 %v499
        %563 = vmatpush1.bf16.msra.mxu0 %v498
        %564 = vmatprep.subr.bf16.mxu0 %v501
        %565 = vmatpush1.bf16.msra.mxu0 %v500
        %566 = vmatprep.mubr.bf16.mxu0 %v329
        %567 = vmatmul.mubr.bf16.gmra.mrb[0].mxu0 %v328
        %v568 = vpop.f32.mrb[0].mxu0
        %v569 = vadd.f32 %v367, %v568
        %v570 = vpop.f32.mrb[0].mxu0
        %v571 = vadd.f32 %v371, %v570
        %v572 = vpop.f32.mrb[0].mxu0
        %v573 = vpop.f32.mrb[0].mxu0
        %574 = vdwg.mxu0
        %v575 = vmax.f32 %v569, 0.0
        %v576 = vmax.f32 %v571, 0.0
        %v577 = vpack.c.bf16 %v575, %v575
        %v578 = vpack.c.bf16 %v576, %v576
        %v579 = vld [vmem:[#allocation7 + $0x8] sm:$0xff]
        %v580 = vld [vmem:[#allocation7 + $0x24] sm:$0xff]
        %v581 = vld [vmem:[#allocation7 + $0x40] sm:$0xff]
        %v582 = vld [vmem:[#allocation7 + $0x5c] sm:$0xff]
        %v583 = vld [vmem:[#allocation7 + $0x78] sm:$0xff]
        %v584 = vld [vmem:[#allocation7 + $0x94] sm:$0xff]
        %v585 = vld [vmem:[#allocation7 + $0xb0] sm:$0xff]
        %v586 = vld [vmem:[#allocation7 + $0xcc] sm:$0xff]
        %v587 = vld [vmem:[#allocation7 + $0xe8] sm:$0xff]
        %v588 = vld [vmem:[#allocation7 + $0x104] sm:$0xff]
        %v589 = vld [vmem:[#allocation7 + $0x120] sm:$0xff]
        %v590 = vld [vmem:[#allocation7 + $0x13c] sm:$0xff]
        %v591 = vld [vmem:[#allocation7 + $0x158] sm:$0xff]
        %v592 = vld [vmem:[#allocation7 + $0x174] sm:$0xff]
        %v593 = vld [vmem:[#allocation7 + $0x190] sm:$0xff]
        %v594 = vld [vmem:[#allocation7 + $0x1ac] sm:$0xff]
        %v595 = vld [vmem:[#allocation7 + $0x1c8] sm:$0xff]
        %v596 = vld [vmem:[#allocation7 + $0x1e4] sm:$0xff]
        %v597 = vld [vmem:[#allocation7 + $0x200] sm:$0xff]
        %v598 = vld [vmem:[#allocation7 + $0x21c] sm:$0xff]
        %v599 = vld [vmem:[#allocation7 + $0x238] sm:$0xff]
        %v600 = vld [vmem:[#allocation7 + $0x254] sm:$0xff]
        %v601 = vld [vmem:[#allocation7 + $0x270] sm:$0xff]
        %v602 = vld [vmem:[#allocation7 + $0x28c] sm:$0xff]
        %v603 = vld [vmem:[#allocation7 + $0x2a8] sm:$0xff]
        %v604 = vld [vmem:[#allocation7 + $0x2c4] sm:$0xff]
        %v605 = vld [vmem:[#allocation7 + $0x2e0] sm:$0xff]
        %v606 = vld [vmem:[#allocation7 + $0x2fc] sm:$0xff]
        %v607 = vld [vmem:[#allocation7 + $0x318] sm:$0xff]
        %v608 = vld [vmem:[#allocation7 + $0x334] sm:$0xff]
        %v609 = vld [vmem:[#allocation7 + $0x350] sm:$0xff]
        %v610 = vld [vmem:[#allocation7 + $0x36c] sm:$0xff]
        %v611 = vld [vmem:[%s3 + $0x4] sm:$0x3]
        %v613 = vlaneseq
        %v614 = vshrl.u32 %v613, 7
        %v615 = vsub.s32 0, %v614
        %v616 = vrot.slane %v611, %v615
        %v617 = vlaneseq
        %v618 = vshrl.u32 %v617, 7
        %v619 = vsub.s32 1, %v618
        %v620 = vrot.slane %v611, %v619
        %v655 = vunpack.c.l.b16 %v579
        %v656 = vunpack.c.h.b16 %v579
        %v657 = vunpack.c.l.b16 %v580
        %v658 = vunpack.c.h.b16 %v580
        %v659 = vunpack.c.l.b16 %v581
        %v660 = vunpack.c.h.b16 %v581
        %v661 = vunpack.c.l.b16 %v582
        %v662 = vunpack.c.h.b16 %v582
        %v663 = vunpack.c.l.b16 %v583
        %v664 = vunpack.c.h.b16 %v583
        %v665 = vunpack.c.l.b16 %v584
        %v666 = vunpack.c.h.b16 %v584
        %v667 = vunpack.c.l.b16 %v585
        %v668 = vunpack.c.h.b16 %v585
        %v669 = vunpack.c.l.b16 %v586
        %v670 = vunpack.c.h.b16 %v586
        %v671 = vunpack.c.l.b16 %v587
        %v672 = vunpack.c.h.b16 %v587
        %v673 = vunpack.c.l.b16 %v588
        %v674 = vunpack.c.h.b16 %v588
        %v675 = vunpack.c.l.b16 %v589
        %v676 = vunpack.c.h.b16 %v589
        %v677 = vunpack.c.l.b16 %v590
        %v678 = vunpack.c.h.b16 %v590
        %v679 = vunpack.c.l.b16 %v591
        %v680 = vunpack.c.h.b16 %v591
        %v681 = vunpack.c.l.b16 %v592
        %v682 = vunpack.c.h.b16 %v592
        %v683 = vunpack.c.l.b16 %v593
        %v684 = vunpack.c.h.b16 %v593
        %v685 = vunpack.c.l.b16 %v594
        %v686 = vunpack.c.h.b16 %v594
        %v687 = vunpack.c.l.b16 %v595
        %v688 = vunpack.c.h.b16 %v595
        %v689 = vunpack.c.l.b16 %v596
        %v690 = vunpack.c.h.b16 %v596
        %v691 = vunpack.c.l.b16 %v597
        %v692 = vunpack.c.h.b16 %v597
        %v693 = vunpack.c.l.b16 %v598
        %v694 = vunpack.c.h.b16 %v598
        %v695 = vunpack.c.l.b16 %v599
        %v696 = vunpack.c.h.b16 %v599
        %v697 = vunpack.c.l.b16 %v600
        %v698 = vunpack.c.h.b16 %v600
        %v699 = vunpack.c.l.b16 %v601
        %v700 = vunpack.c.h.b16 %v601
        %v701 = vunpack.c.l.b16 %v602
        %v702 = vunpack.c.h.b16 %v602
        %v703 = vunpack.c.l.b16 %v603
        %v704 = vunpack.c.h.b16 %v603
        %v705 = vunpack.c.l.b16 %v604
        %v706 = vunpack.c.h.b16 %v604
        %v707 = vunpack.c.l.b16 %v605
        %v708 = vunpack.c.h.b16 %v605
        %v709 = vunpack.c.l.b16 %v606
        %v710 = vunpack.c.h.b16 %v606
        %v711 = vunpack.c.l.b16 %v607
        %v712 = vunpack.c.h.b16 %v607
        %v713 = vunpack.c.l.b16 %v608
        %v714 = vunpack.c.h.b16 %v608
        %v715 = vunpack.c.l.b16 %v609
        %v716 = vunpack.c.h.b16 %v609
        %v717 = vunpack.c.l.b16 %v610
        %v718 = vunpack.c.h.b16 %v610
        %v719 = vpack.c.b16 %v657, %v655
        %v720 = vpack.c.b16 %v658, %v656
        %v721 = vpack.c.b16 %v661, %v659
        %v722 = vpack.c.b16 %v662, %v660
        %v723 = vpack.c.b16 %v665, %v663
        %v724 = vpack.c.b16 %v666, %v664
        %v725 = vpack.c.b16 %v669, %v667
        %v726 = vpack.c.b16 %v670, %v668
        %v727 = vpack.c.b16 %v673, %v671
        %v728 = vpack.c.b16 %v674, %v672
        %v729 = vpack.c.b16 %v677, %v675
        %v730 = vpack.c.b16 %v678, %v676
        %v731 = vpack.c.b16 %v681, %v679
        %v732 = vpack.c.b16 %v682, %v680
        %v733 = vpack.c.b16 %v685, %v683
        %v734 = vpack.c.b16 %v686, %v684
        %v735 = vpack.c.b16 %v689, %v687
        %v736 = vpack.c.b16 %v690, %v688
        %v737 = vpack.c.b16 %v693, %v691
        %v738 = vpack.c.b16 %v694, %v692
        %v739 = vpack.c.b16 %v697, %v695
        %v740 = vpack.c.b16 %v698, %v696
        %v741 = vpack.c.b16 %v701, %v699
        %v742 = vpack.c.b16 %v702, %v700
        %v743 = vpack.c.b16 %v705, %v703
        %v744 = vpack.c.b16 %v706, %v704
        %v745 = vpack.c.b16 %v709, %v707
        %v746 = vpack.c.b16 %v710, %v708
        %v747 = vpack.c.b16 %v713, %v711
        %v748 = vpack.c.b16 %v714, %v712
        %v749 = vpack.c.b16 %v717, %v715
        %v750 = vpack.c.b16 %v718, %v716
        %783 = vmatprep.subr.bf16.mxu0 %v720
        %784 = vmatpush1.bf16.msra.mxu0 %v719
        %785 = vmatprep.subr.bf16.mxu0 %v722
        %786 = vmatpush1.bf16.msra.mxu0 %v721
        %787 = vmatprep.subr.bf16.mxu0 %v724
        %788 = vmatpush1.bf16.msra.mxu0 %v723
        %789 = vmatprep.subr.bf16.mxu0 %v726
        %790 = vmatpush1.bf16.msra.mxu0 %v725
        %791 = vmatprep.subr.bf16.mxu0 %v728
        %792 = vmatpush1.bf16.msra.mxu0 %v727
        %793 = vmatprep.subr.bf16.mxu0 %v730
        %794 = vmatpush1.bf16.msra.mxu0 %v729
        %795 = vmatprep.subr.bf16.mxu0 %v732
        %796 = vmatpush1.bf16.msra.mxu0 %v731
        %797 = vmatprep.subr.bf16.mxu0 %v734
        %798 = vmatpush1.bf16.msra.mxu0 %v733
        %799 = vmatprep.subr.bf16.mxu0 %v736
        %800 = vmatpush1.bf16.msra.mxu0 %v735
        %801 = vmatprep.subr.bf16.mxu0 %v738
        %802 = vmatpush1.bf16.msra.mxu0 %v737
        %803 = vmatprep.subr.bf16.mxu0 %v740
        %804 = vmatpush1.bf16.msra.mxu0 %v739
        %805 = vmatprep.subr.bf16.mxu0 %v742
        %806 = vmatpush1.bf16.msra.mxu0 %v741
        %807 = vmatprep.subr.bf16.mxu0 %v744
        %808 = vmatpush1.bf16.msra.mxu0 %v743
        %809 = vmatprep.subr.bf16.mxu0 %v746
        %810 = vmatpush1.bf16.msra.mxu0 %v745
        %811 = vmatprep.subr.bf16.mxu0 %v748
        %812 = vmatpush1.bf16.msra.mxu0 %v747
        %813 = vmatprep.subr.bf16.mxu0 %v750
        %814 = vmatpush1.bf16.msra.mxu0 %v749
        %815 = vmatprep.mubr.bf16.mxu0 %v578
        %816 = vmatmul.mubr.bf16.gmra.mrb[0].mxu0 %v577
        %v817 = vpop.f32.mrb[0].mxu0
        %v818 = vadd.f32 %v616, %v817
        %v819 = vpop.f32.mrb[0].mxu0
        %v820 = vadd.f32 %v620, %v819
        %v821 = vpop.f32.mrb[0].mxu0
        %v822 = vpop.f32.mrb[0].mxu0
        %823 = vdwg.mxu0
        %v824 = vmax.f32 %v818, 0.0
        %v825 = vmax.f32 %v820, 0.0
        %v826 = vpack.c.bf16 %v824, %v824
        %v827 = vpack.c.bf16 %v825, %v825
        %v828 = vld [vmem:[#allocation7 + $0x10] sm:$0xff]
        %v829 = vld [vmem:[#allocation7 + $0x2c] sm:$0xff]
        %v830 = vld [vmem:[#allocation7 + $0x48] sm:$0xff]
        %v831 = vld [vmem:[#allocation7 + $0x64] sm:$0xff]
        %v832 = vld [vmem:[#allocation7 + $0x80] sm:$0xff]
        %v833 = vld [vmem:[#allocation7 + $0x9c] sm:$0xff]
        %v834 = vld [vmem:[#allocation7 + $0xb8] sm:$0xff]
        %v835 = vld [vmem:[#allocation7 + $0xd4] sm:$0xff]
        %v836 = vld [vmem:[#allocation7 + $0xf0] sm:$0xff]
        %v837 = vld [vmem:[#allocation7 + $0x10c] sm:$0xff]
        %v838 = vld [vmem:[#allocation7 + $0x128] sm:$0xff]
        %v839 = vld [vmem:[#allocation7 + $0x144] sm:$0xff]
        %v840 = vld [vmem:[#allocation7 + $0x160] sm:$0xff]
        %v841 = vld [vmem:[#allocation7 + $0x17c] sm:$0xff]
        %v842 = vld [vmem:[#allocation7 + $0x198] sm:$0xff]
        %v843 = vld [vmem:[#allocation7 + $0x1b4] sm:$0xff]
        %v844 = vld [vmem:[#allocation7 + $0x1d0] sm:$0xff]
        %v845 = vld [vmem:[#allocation7 + $0x1ec] sm:$0xff]
        %v846 = vld [vmem:[#allocation7 + $0x208] sm:$0xff]
        %v847 = vld [vmem:[#allocation7 + $0x224] sm:$0xff]
        %v848 = vld [vmem:[#allocation7 + $0x240] sm:$0xff]
        %v849 = vld [vmem:[#allocation7 + $0x25c] sm:$0xff]
        %v850 = vld [vmem:[#allocation7 + $0x278] sm:$0xff]
        %v851 = vld [vmem:[#allocation7 + $0x294] sm:$0xff]
        %v852 = vld [vmem:[#allocation7 + $0x2b0] sm:$0xff]
        %v853 = vld [vmem:[#allocation7 + $0x2cc] sm:$0xff]
        %v854 = vld [vmem:[#allocation7 + $0x2e8] sm:$0xff]
        %v855 = vld [vmem:[#allocation7 + $0x304] sm:$0xff]
        %v856 = vld [vmem:[#allocation7 + $0x320] sm:$0xff]
        %v857 = vld [vmem:[#allocation7 + $0x33c] sm:$0xff]
        %v858 = vld [vmem:[#allocation7 + $0x358] sm:$0xff]
        %v859 = vld [vmem:[#allocation7 + $0x374] sm:$0xff]
        %v860 = vld [vmem:[%s3 + $0x6] sm:$0x3]
        %v862 = vlaneseq
        %v863 = vshrl.u32 %v862, 7
        %v864 = vsub.s32 0, %v863
        %v865 = vrot.slane %v860, %v864
        %v866 = vlaneseq
        %v867 = vshrl.u32 %v866, 7
        %v868 = vsub.s32 1, %v867
        %v869 = vrot.slane %v860, %v868
        %v904 = vunpack.c.l.b16 %v828
        %v905 = vunpack.c.h.b16 %v828
        %v906 = vunpack.c.l.b16 %v829
        %v907 = vunpack.c.h.b16 %v829
        %v908 = vunpack.c.l.b16 %v830
        %v909 = vunpack.c.h.b16 %v830
        %v910 = vunpack.c.l.b16 %v831
        %v911 = vunpack.c.h.b16 %v831
        %v912 = vunpack.c.l.b16 %v832
        %v913 = vunpack.c.h.b16 %v832
        %v914 = vunpack.c.l.b16 %v833
        %v915 = vunpack.c.h.b16 %v833
        %v916 = vunpack.c.l.b16 %v834
        %v917 = vunpack.c.h.b16 %v834
        %v918 = vunpack.c.l.b16 %v835
        %v919 = vunpack.c.h.b16 %v835
        %v920 = vunpack.c.l.b16 %v836
        %v921 = vunpack.c.h.b16 %v836
        %v922 = vunpack.c.l.b16 %v837
        %v923 = vunpack.c.h.b16 %v837
        %v924 = vunpack.c.l.b16 %v838
        %v925 = vunpack.c.h.b16 %v838
        %v926 = vunpack.c.l.b16 %v839
        %v927 = vunpack.c.h.b16 %v839
        %v928 = vunpack.c.l.b16 %v840
        %v929 = vunpack.c.h.b16 %v840
        %v930 = vunpack.c.l.b16 %v841
        %v931 = vunpack.c.h.b16 %v841
        %v932 = vunpack.c.l.b16 %v842
        %v933 = vunpack.c.h.b16 %v842
        %v934 = vunpack.c.l.b16 %v843
        %v935 = vunpack.c.h.b16 %v843
        %v936 = vunpack.c.l.b16 %v844
        %v937 = vunpack.c.h.b16 %v844
        %v938 = vunpack.c.l.b16 %v845
        %v939 = vunpack.c.h.b16 %v845
        %v940 = vunpack.c.l.b16 %v846
        %v941 = vunpack.c.h.b16 %v846
        %v942 = vunpack.c.l.b16 %v847
        %v943 = vunpack.c.h.b16 %v847
        %v944 = vunpack.c.l.b16 %v848
        %v945 = vunpack.c.h.b16 %v848
        %v946 = vunpack.c.l.b16 %v849
        %v947 = vunpack.c.h.b16 %v849
        %v948 = vunpack.c.l.b16 %v850
        %v949 = vunpack.c.h.b16 %v850
        %v950 = vunpack.c.l.b16 %v851
        %v951 = vunpack.c.h.b16 %v851
        %v952 = vunpack.c.l.b16 %v852
        %v953 = vunpack.c.h.b16 %v852
        %v954 = vunpack.c.l.b16 %v853
        %v955 = vunpack.c.h.b16 %v853
        %v956 = vunpack.c.l.b16 %v854
        %v957 = vunpack.c.h.b16 %v854
        %v958 = vunpack.c.l.b16 %v855
        %v959 = vunpack.c.h.b16 %v855
        %v960 = vunpack.c.l.b16 %v856
        %v961 = vunpack.c.h.b16 %v856
        %v962 = vunpack.c.l.b16 %v857
        %v963 = vunpack.c.h.b16 %v857
        %v964 = vunpack.c.l.b16 %v858
        %v965 = vunpack.c.h.b16 %v858
        %v966 = vunpack.c.l.b16 %v859
        %v967 = vunpack.c.h.b16 %v859
        %v968 = vpack.c.b16 %v906, %v904
        %v969 = vpack.c.b16 %v907, %v905
        %v970 = vpack.c.b16 %v910, %v908
        %v971 = vpack.c.b16 %v911, %v909
        %v972 = vpack.c.b16 %v914, %v912
        %v973 = vpack.c.b16 %v915, %v913
        %v974 = vpack.c.b16 %v918, %v916
        %v975 = vpack.c.b16 %v919, %v917
        %v976 = vpack.c.b16 %v922, %v920
        %v977 = vpack.c.b16 %v923, %v921
        %v978 = vpack.c.b16 %v926, %v924
        %v979 = vpack.c.b16 %v927, %v925
        %v980 = vpack.c.b16 %v930, %v928
        %v981 = vpack.c.b16 %v931, %v929
        %v982 = vpack.c.b16 %v934, %v932
        %v983 = vpack.c.b16 %v935, %v933
        %v984 = vpack.c.b16 %v938, %v936
        %v985 = vpack.c.b16 %v939, %v937
        %v986 = vpack.c.b16 %v942, %v940
        %v987 = vpack.c.b16 %v943, %v941
        %v988 = vpack.c.b16 %v946, %v944
        %v989 = vpack.c.b16 %v947, %v945
        %v990 = vpack.c.b16 %v950, %v948
        %v991 = vpack.c.b16 %v951, %v949
        %v992 = vpack.c.b16 %v954, %v952
        %v993 = vpack.c.b16 %v955, %v953
        %v994 = vpack.c.b16 %v958, %v956
        %v995 = vpack.c.b16 %v959, %v957
        %v996 = vpack.c.b16 %v962, %v960
        %v997 = vpack.c.b16 %v963, %v961
        %v998 = vpack.c.b16 %v966, %v964
        %v999 = vpack.c.b16 %v967, %v965
        %1032 = vmatprep.subr.bf16.mxu0 %v969
        %1033 = vmatpush1.bf16.msra.mxu0 %v968
        %1034 = vmatprep.subr.bf16.mxu0 %v971
        %1035 = vmatpush1.bf16.msra.mxu0 %v970
        %1036 = vmatprep.subr.bf16.mxu0 %v973
        %1037 = vmatpush1.bf16.msra.mxu0 %v972
        %1038 = vmatprep.subr.bf16.mxu0 %v975
        %1039 = vmatpush1.bf16.msra.mxu0 %v974
        %1040 = vmatprep.subr.bf16.mxu0 %v977
        %1041 = vmatpush1.bf16.msra.mxu0 %v976
        %1042 = vmatprep.subr.bf16.mxu0 %v979
        %1043 = vmatpush1.bf16.msra.mxu0 %v978
        %1044 = vmatprep.subr.bf16.mxu0 %v981
        %1045 = vmatpush1.bf16.msra.mxu0 %v980
        %1046 = vmatprep.subr.bf16.mxu0 %v983
        %1047 = vmatpush1.bf16.msra.mxu0 %v982
        %1048 = vmatprep.subr.bf16.mxu0 %v985
        %1049 = vmatpush1.bf16.msra.mxu0 %v984
        %1050 = vmatprep.subr.bf16.mxu0 %v987
        %1051 = vmatpush1.bf16.msra.mxu0 %v986
        %1052 = vmatprep.subr.bf16.mxu0 %v989
        %1053 = vmatpush1.bf16.msra.mxu0 %v988
        %1054 = vmatprep.subr.bf16.mxu0 %v991
        %1055 = vmatpush1.bf16.msra.mxu0 %v990
        %1056 = vmatprep.subr.bf16.mxu0 %v993
        %1057 = vmatpush1.bf16.msra.mxu0 %v992
        %1058 = vmatprep.subr.bf16.mxu0 %v995
        %1059 = vmatpush1.bf16.msra.mxu0 %v994
        %1060 = vmatprep.subr.bf16.mxu0 %v997
        %1061 = vmatpush1.bf16.msra.mxu0 %v996
        %1062 = vmatprep.subr.bf16.mxu0 %v999
        %1063 = vmatpush1.bf16.msra.mxu0 %v998
        %1064 = vmatprep.mubr.bf16.mxu0 %v827
        %1065 = vmatmul.mubr.bf16.gmra.mrb[0].mxu0 %v826
        %v1066 = vpop.f32.mrb[0].mxu0
        %v1067 = vadd.f32 %v865, %v1066
        %v1068 = vpop.f32.mrb[0].mxu0
        %v1069 = vadd.f32 %v869, %v1068
        %v1070 = vpop.f32.mrb[0].mxu0
        %v1071 = vpop.f32.mrb[0].mxu0
        %1072 = vdwg.mxu0
        %v1073 = vmax.f32 %v1067, 0.0
        %v1074 = vmax.f32 %v1069, 0.0
        %v1075 = vpack.c.bf16 %v1073, %v1073
        %v1076 = vpack.c.bf16 %v1074, %v1074
        %v1077 = vld [vmem:[#allocation7 + $0x18] sm:$0xf]
        %v1078 = vld [vmem:[#allocation7 + $0x34] sm:$0xf]
        %v1079 = vld [vmem:[#allocation7 + $0x50] sm:$0xf]
        %v1080 = vld [vmem:[#allocation7 + $0x6c] sm:$0xf]
        %v1081 = vld [vmem:[#allocation7 + $0x88] sm:$0xf]
        %v1082 = vld [vmem:[#allocation7 + $0xa4] sm:$0xf]
        %v1083 = vld [vmem:[#allocation7 + $0xc0] sm:$0xf]
        %v1084 = vld [vmem:[#allocation7 + $0xdc] sm:$0xf]
        %v1085 = vld [vmem:[#allocation7 + $0xf8] sm:$0xf]
        %v1086 = vld [vmem:[#allocation7 + $0x114] sm:$0xf]
        %v1087 = vld [vmem:[#allocation7 + $0x130] sm:$0xf]
        %v1088 = vld [vmem:[#allocation7 + $0x14c] sm:$0xf]
        %v1089 = vld [vmem:[#allocation7 + $0x168] sm:$0xf]
        %v1090 = vld [vmem:[#allocation7 + $0x184] sm:$0xf]
        %v1091 = vld [vmem:[#allocation7 + $0x1a0] sm:$0xf]
        %v1092 = vld [vmem:[#allocation7 + $0x1bc] sm:$0xf]
        %v1093 = vld [vmem:[#allocation7 + $0x1d8] sm:$0xf]
        %v1094 = vld [vmem:[#allocation7 + $0x1f4] sm:$0xf]
        %v1095 = vld [vmem:[#allocation7 + $0x210] sm:$0xf]
        %v1096 = vld [vmem:[#allocation7 + $0x22c] sm:$0xf]
        %v1097 = vld [vmem:[#allocation7 + $0x248] sm:$0xf]
        %v1098 = vld [vmem:[#allocation7 + $0x264] sm:$0xf]
        %v1099 = vld [vmem:[#allocation7 + $0x280] sm:$0xf]
        %v1100 = vld [vmem:[#allocation7 + $0x29c] sm:$0xf]
        %v1101 = vld [vmem:[#allocation7 + $0x2b8] sm:$0xf]
        %v1102 = vld [vmem:[#allocation7 + $0x2d4] sm:$0xf]
        %v1103 = vld [vmem:[#allocation7 + $0x2f0] sm:$0xf]
        %v1104 = vld [vmem:[#allocation7 + $0x30c] sm:$0xf]
        %v1105 = vld [vmem:[#allocation7 + $0x328] sm:$0xf]
        %v1106 = vld [vmem:[#allocation7 + $0x344] sm:$0xf]
        %v1107 = vld [vmem:[#allocation7 + $0x360] sm:$0xf]
        %v1108 = vld [vmem:[#allocation7 + $0x37c] sm:$0xf]
        %v1109 = vld [vmem:[%s3 + $0x8] sm:$0x1]
        %v1111 = vlaneseq
        %v1112 = vshrl.u32 %v1111, 7
        %v1113 = vsub.s32 0, %v1112
        %v1114 = vrot.slane %v1109, %v1113
        %v1148 = vunpack.c.l.b16 %v1077
        %v1149 = vunpack.c.l.b16 %v1078
        %v1150 = vunpack.c.l.b16 %v1079
        %v1151 = vunpack.c.l.b16 %v1080
        %v1152 = vunpack.c.l.b16 %v1081
        %v1153 = vunpack.c.l.b16 %v1082
        %v1154 = vunpack.c.l.b16 %v1083
        %v1155 = vunpack.c.l.b16 %v1084
        %v1156 = vunpack.c.l.b16 %v1085
        %v1157 = vunpack.c.l.b16 %v1086
        %v1158 = vunpack.c.l.b16 %v1087
        %v1159 = vunpack.c.l.b16 %v1088
        %v1160 = vunpack.c.l.b16 %v1089
        %v1161 = vunpack.c.l.b16 %v1090
        %v1162 = vunpack.c.l.b16 %v1091
        %v1163 = vunpack.c.l.b16 %v1092
        %v1164 = vunpack.c.l.b16 %v1093
        %v1165 = vunpack.c.l.b16 %v1094
        %v1166 = vunpack.c.l.b16 %v1095
        %v1167 = vunpack.c.l.b16 %v1096
        %v1168 = vunpack.c.l.b16 %v1097
        %v1169 = vunpack.c.l.b16 %v1098
        %v1170 = vunpack.c.l.b16 %v1099
        %v1171 = vunpack.c.l.b16 %v1100
        %v1172 = vunpack.c.l.b16 %v1101
        %v1173 = vunpack.c.l.b16 %v1102
        %v1174 = vunpack.c.l.b16 %v1103
        %v1175 = vunpack.c.l.b16 %v1104
        %v1176 = vunpack.c.l.b16 %v1105
        %v1177 = vunpack.c.l.b16 %v1106
        %v1178 = vunpack.c.l.b16 %v1107
        %v1179 = vunpack.c.l.b16 %v1108
        %v1180 = vpack.c.b16 %v1149, %v1148
        %v1181 = vpack.c.b16 %v1151, %v1150
        %v1182 = vpack.c.b16 %v1153, %v1152
        %v1183 = vpack.c.b16 %v1155, %v1154
        %v1184 = vpack.c.b16 %v1157, %v1156
        %v1185 = vpack.c.b16 %v1159, %v1158
        %v1186 = vpack.c.b16 %v1161, %v1160
        %v1187 = vpack.c.b16 %v1163, %v1162
        %v1188 = vpack.c.b16 %v1165, %v1164
        %v1189 = vpack.c.b16 %v1167, %v1166
        %v1190 = vpack.c.b16 %v1169, %v1168
        %v1191 = vpack.c.b16 %v1171, %v1170
        %v1192 = vpack.c.b16 %v1173, %v1172
        %v1193 = vpack.c.b16 %v1175, %v1174
        %v1194 = vpack.c.b16 %v1177, %v1176
        %v1195 = vpack.c.b16 %v1179, %v1178
        %1212 = vmatprep.subr.bf16.mxu0 0
        %1213 = vmatpush1.bf16.msra.mxu0 %v1180
        %1214 = vmatprep.subr.bf16.mxu0 0
        %1215 = vmatpush1.bf16.msra.mxu0 %v1181
        %1216 = vmatprep.subr.bf16.mxu0 0
        %1217 = vmatpush1.bf16.msra.mxu0 %v1182
        %1218 = vmatprep.subr.bf16.mxu0 0
        %1219 = vmatpush1.bf16.msra.mxu0 %v1183
        %1220 = vmatprep.subr.bf16.mxu0 0
        %1221 = vmatpush1.bf16.msra.mxu0 %v1184
        %1222 = vmatprep.subr.bf16.mxu0 0
        %1223 = vmatpush1.bf16.msra.mxu0 %v1185
        %1224 = vmatprep.subr.bf16.mxu0 0
        %1225 = vmatpush1.bf16.msra.mxu0 %v1186
        %1226 = vmatprep.subr.bf16.mxu0 0
        %1227 = vmatpush1.bf16.msra.mxu0 %v1187
        %1228 = vmatprep.subr.bf16.mxu0 0
        %1229 = vmatpush1.bf16.msra.mxu0 %v1188
        %1230 = vmatprep.subr.bf16.mxu0 0
        %1231 = vmatpush1.bf16.msra.mxu0 %v1189
        %1232 = vmatprep.subr.bf16.mxu0 0
        %1233 = vmatpush1.bf16.msra.mxu0 %v1190
        %1234 = vmatprep.subr.bf16.mxu0 0
        %1235 = vmatpush1.bf16.msra.mxu0 %v1191
        %1236 = vmatprep.subr.bf16.mxu0 0
        %1237 = vmatpush1.bf16.msra.mxu0 %v1192
        %1238 = vmatprep.subr.bf16.mxu0 0
        %1239 = vmatpush1.bf16.msra.mxu0 %v1193
        %1240 = vmatprep.subr.bf16.mxu0 0
        %1241 = vmatpush1.bf16.msra.mxu0 %v1194
        %1242 = vmatprep.subr.bf16.mxu0 0
        %1243 = vmatpush1.bf16.msra.mxu0 %v1195
        %1244 = vmatprep.mubr.bf16.mxu0 %v1076
        %1245 = vmatmul.mubr.bf16.gmra.mrb[0].mxu0 %v1075
        %v1246 = vpop.f32.mrb[0].mxu0
        %v1247 = vadd.f32 %v1114, %v1246
        %v1248 = vpop.f32.mrb[0].mxu0
        %v1249 = vpop.f32.mrb[0].mxu0
        %v1250 = vpop.f32.mrb[0].mxu0
        %1251 = vdwg.mxu0
        %1252 = vst [vmem:[%s241] sm:$0xff] %v1247
        %s1253 = sand.u32 %s119, 1
        %s1254 = scalar_lea.sflag [#allocation4], %s1253
        %s1255 = sand.u32 %s119, 1
        %s1256 = smul.addr %s1255, 8
        %s1257 = scalar_lea.vmem [#allocation8], %s1256
        // Predicated region
        $region49: #{tpu_custom_call.1} parent=35 // pred_check
          %p1258 = pneg %p129
        $region50: #{tpu_custom_call.1} parent=35 // pred_check_branch
          %1260 = sbr.rel (%p1258) target = $region52
        $region51: #{tpu_custom_call.1} parent=35 // pred_region
          %s1262 = ssub.s32 128, 128
          %1263 = vsyncadd %s1254, %s1262
          %s1264 = smul.addr %s22, 128
          %s1265 = scalar_lea.hbm %s4, %s1264
          %s1267 = sshll.u32 %s1257, 4
          %s1268 = int_to_ptr.vmem [resolvable:$true] %s1267
          %1270 = dma.vmem_to_hbm [thread:$0]  %s1268, 128, %s1265, %s1254
        $region52: #{tpu_custom_call.1} parent=35 // pred_fallthru
          _
      $region36: #{tpu_custom_call.1} parent=5 // pred_fallthru
        _
      %p1271 = scmp.le.s32.totalorder 2, %s17
      // Predicated region
      $region53: #{tpu_custom_call.1} parent=5 // pred_check
        %p1272 = pneg %p1271
      $region54: #{tpu_custom_call.1} parent=5 // pred_check_branch
        %1274 = sbr.rel (%p1272) target = $region56
      $region55: #{tpu_custom_call.1} parent=5 // pred_region
        %s1275 = ssub.s32 %s17, 2
        // Predicated region
        $region57: #{tpu_custom_call.1} parent=55 // pred_check
          %p1276 = pneg %p135
        $region58: #{tpu_custom_call.1} parent=55 // pred_check_branch
          %1278 = sbr.rel (%p1276) target = $region60
        $region59: #{tpu_custom_call.1} parent=55 // pred_region
          %s1279 = sand.u32 %s120, 1
          %s1280 = scalar_lea.sflag [#allocation4], %s1279
          %s1281 = sand.u32 %s120, 1
          %s1282 = smul.addr %s1281, 8
          %s1283 = scalar_lea.vmem [#allocation8], %s1282
          %1284 = dma.done %s1280, 128
        $region60: #{tpu_custom_call.1} parent=55 // pred_fallthru
          _
      $region56: #{tpu_custom_call.1} parent=5 // pred_fallthru
        _
    $region6: #{tpu_custom_call.1} parent=1 // loop_footer
      %s21 = sadd.s32 1, %s17
    $region7: #{tpu_custom_call.1} parent=1 // loop_footer_branch
      %16 = sbr.rel target = $region3
    $region8: #{tpu_custom_call.1} parent=1 // loop_exit
      _
    %1285 = vsyncpa [#allocation3], 1
    %s1286 = scalar_lea.sflag [#allocation3], 1
    %1287 = vsyncpa %s1286, 1
    %1288 = vsyncpa [#allocation6], 1
    %1289 = vsyncpa [#allocation4], 1
    %s1290 = scalar_lea.sflag [#allocation4], 1
    %1291 = vsyncpa %s1290, 1

</llo_original>
